<compile_context>
chip_gen: v7x
topology: tpu7x:2x2x1
jax: 0.10.0
libtpu: 0.0.40
codegen_flags: <defaults>
</compile_context>

<pallas_src>
import functools
import math

import jax
import jax.numpy as jnp
from jax.experimental import pallas as pl
from jax.experimental.pallas import tpu as pltpu


# ---------------------------------------------------------------------------
# Fused MLP kernel
# ---------------------------------------------------------------------------

def _mlp_kernel(x_ref, w1_ref, b1_ref, w2_ref, b2_ref, w3_ref, b3_ref,
                w4_ref, b4_ref, o_ref):
    """out = sigmoid(relu(relu(relu(x@W1+b1)@W2+b2)@W3+b3)@W4+b4).

    Matmul operands are bf16 (MXU-native); accumulation and all elementwise
    math (bias add / ReLU / sigmoid) are f32.  Dropout (eval) is identity.
    """
    h = jnp.dot(x_ref[...], w1_ref[...],
                preferred_element_type=jnp.float32) + b1_ref[...]
    h = jnp.maximum(h, 0.0)
    h = jnp.dot(h.astype(jnp.bfloat16), w2_ref[...],
                preferred_element_type=jnp.float32) + b2_ref[...]
    h = jnp.maximum(h, 0.0)
    h = jnp.dot(h.astype(jnp.bfloat16), w3_ref[...],
                preferred_element_type=jnp.float32) + b3_ref[...]
    h = jnp.maximum(h, 0.0)
    h = jnp.dot(h.astype(jnp.bfloat16), w4_ref[...],
                preferred_element_type=jnp.float32) + b4_ref[...]
    o_ref[...] = jax.nn.sigmoid(h).astype(o_ref.dtype)


_BATCH_TILE = 1024   # max rows per grid step (multiple of 16 for bf16 packing)
_SMALL_BATCH = 512   # at or below this, a single grid-less launch is cheapest


def _round_up(x, m):
    return ((x + m - 1) // m) * m


def _mlp_pallas(x2, W1, b1, W2, b2, W3, b3, W4, b4, out_dtype):
    B, N = x2.shape
    H1 = W1.shape[1]
    H2 = W2.shape[1]
    H3 = W3.shape[1]
    out_dim = W4.shape[1]

    # bf16 matmul operands; biases stay f32 (added to the f32 accumulator).
    x_bf = x2.astype(jnp.bfloat16)
    w_args = (
        W1.astype(jnp.bfloat16), b1.reshape(1, H1).astype(jnp.float32),
        W2.astype(jnp.bfloat16), b2.reshape(1, H2).astype(jnp.float32),
        W3.astype(jnp.bfloat16), b3.reshape(1, H3).astype(jnp.float32),
        W4.astype(jnp.bfloat16), b4.reshape(1, out_dim).astype(jnp.float32),
    )

    if B <= _SMALL_BATCH:
        # Small batch: single grid-less launch, everything resident in VMEM.
        vmem = functools.partial(pl.BlockSpec,
                                 memory_space=pltpu.MemorySpace.VMEM)
        return pl.pallas_call(
            _mlp_kernel,
            out_shape=jax.ShapeDtypeStruct((B, out_dim), out_dtype),
            in_specs=[vmem() for _ in range(9)],
            out_specs=vmem(),
        )(x_bf, *w_args)

    # Large batch: tile the batch dimension; weights stay resident (constant
    # index_map blocks are not re-DMA'd).  Tile is capped at _BATCH_TILE and,
    # when possible, chosen so the grid has >=2 steps (v7x megacore sharding);
    # always a multiple of 16 for bf16 sublane packing.
    tb = min(_BATCH_TILE, _round_up(pl.cdiv(B, 2), 16))
    Bp = _round_up(B, tb)
    if Bp != B:
        x_bf = jnp.pad(x_bf, ((0, Bp - B), (0, 0)))

    full = lambda shape: pl.BlockSpec(shape, lambda i: (0, 0))
    out = pl.pallas_call(
        _mlp_kernel,
        out_shape=jax.ShapeDtypeStruct((Bp, out_dim), out_dtype),
        grid=(Bp // tb,),
        in_specs=[
            pl.BlockSpec((tb, N), lambda i: (i, 0)),
            full((N, H1)), full((1, H1)),
            full((H1, H2)), full((1, H2)),
            full((H2, H3)), full((1, H3)),
            full((H3, out_dim)), full((1, out_dim)),
        ],
        out_specs=pl.BlockSpec((tb, out_dim), lambda i: (i, 0)),
        compiler_params=pltpu.CompilerParams(
            dimension_semantics=("parallel",)),
    )(x_bf, *w_args)
    return out[:B] if Bp != B else out


@functools.partial(jax.jit, static_argnames=("out_dtype",))
def mlp_benchmark_forward(params, x, out_dtype=jnp.bfloat16):
    """Mirrors MLP_benchmark.forward: x.reshape(-1, N) -> linears -> sigmoid."""
    N = params["W1"].shape[0]
    x2 = x.reshape(-1, N)
    return _mlp_pallas(
        x2,
        params["W1"], params["b1"],
        params["W2"], params["b2"],
        params["W3"], params["b3"],
        params["W4"], params["b4"],
        out_dtype,
    )


# ---------------------------------------------------------------------------
# Pure-JAX reference (for correctness checking only)
# ---------------------------------------------------------------------------

def _mlp_ref(params, x):
    N = params["W1"].shape[0]
    h = x.reshape(-1, N).astype(jnp.float32)
    h = jnp.maximum(h @ params["W1"] + params["b1"], 0.0)
    h = jnp.maximum(h @ params["W2"] + params["b2"], 0.0)
    h = jnp.maximum(h @ params["W3"] + params["b3"], 0.0)
    h = h @ params["W4"] + params["b4"]
    return jax.nn.sigmoid(h)


# ---------------------------------------------------------------------------
# Deterministic parameter init (matches torch.nn.Linear default init scheme)
# ---------------------------------------------------------------------------

def _linear_init(key, fan_in, fan_out):
    kw, kb = jax.random.split(key)
    bound = 1.0 / math.sqrt(fan_in)
    W = jax.random.uniform(kw, (fan_in, fan_out), jnp.float32, -bound, bound)
    b = jax.random.uniform(kb, (fan_out,), jnp.float32, -bound, bound)
    return W, b


def init_params(key, T, max_nodes):
    N = max_nodes
    hidden = N * int(math.ceil(T / 4))
    out_dim = N * T
    k1, k2, k3, k4 = jax.random.split(key, 4)
    p = {}
    p["W1"], p["b1"] = _linear_init(k1, N, hidden)
    p["W2"], p["b2"] = _linear_init(k2, hidden, hidden)
    p["W3"], p["b3"] = _linear_init(k3, hidden, out_dim)
    p["W4"], p["b4"] = _linear_init(k4, out_dim, out_dim)
    return p


# ---------------------------------------------------------------------------
if __name__ == "__main__":
    N = 16          # max_nodes
    T = 8
    B = 4           # batch rows after x.reshape(-1, N)
    out_dim = N * T  # 128

    root = jax.random.PRNGKey(0)
    k_param, k_x, k_x2 = jax.random.split(root, 3)

    params = init_params(k_param, T, N)

    # --- small-batch (grid-less) path ---
    x = jax.random.normal(k_x, (B * N,), jnp.float32)
    y = mlp_benchmark_forward(params, x)
    jax.block_until_ready(y)
    assert y.shape == (B, out_dim), y.shape
    y32 = y.astype(jnp.float32)
    assert bool(jnp.all((y32 >= 0.0) & (y32 <= 1.0)))   # sigmoid output range
    ref = _mlp_ref(params, x)
    assert bool(jnp.max(jnp.abs(y32 - ref)) < 2e-2), "small-path mismatch"

    # --- tiled path (batch padded up to tile, >=2 grid steps) ---
    B_big = 1500   # not a multiple of the tile -> exercises the padding path
    x_big = jax.random.normal(k_x2, (B_big * N,), jnp.float32)
    y_big = mlp_benchmark_forward(params, x_big)
    jax.block_until_ready(y_big)
    assert y_big.shape == (B_big, out_dim), y_big.shape
    ref_big = _mlp_ref(params, x_big)
    assert bool(jnp.max(jnp.abs(y_big.astype(jnp.float32) - ref_big)) < 2e-2), \
        "tiled-path mismatch"

    print("KERNEL_OK")
</pallas_src>

<mosaic_0001>
module attributes {stable_mosaic.version = 11 : i64} {
  func.func @_mlp_kernel(%arg0: memref<4x16xbf16, #tpu.memory_space<vmem>>, %arg1: memref<16x32xbf16, #tpu.memory_space<vmem>>, %arg2: memref<1x32xf32, #tpu.memory_space<vmem>>, %arg3: memref<32x32xbf16, #tpu.memory_space<vmem>>, %arg4: memref<1x32xf32, #tpu.memory_space<vmem>>, %arg5: memref<32x128xbf16, #tpu.memory_space<vmem>>, %arg6: memref<1x128xf32, #tpu.memory_space<vmem>>, %arg7: memref<128x128xbf16, #tpu.memory_space<vmem>>, %arg8: memref<1x128xf32, #tpu.memory_space<vmem>>, %arg9: memref<4x128xbf16, #tpu.memory_space<vmem>>) attributes {dimension_semantics = [], scalar_prefetch = 0 : i64, scratch_operands = 0 : i64, tpu.core_type = #tpu.core_type<tc>} {
    %c0 = arith.constant 0 : index
    %c0_0 = arith.constant 0 : index
    %0 = vector.load %arg0[%c0, %c0_0] : memref<4x16xbf16, #tpu.memory_space<vmem>>, vector<4x16xbf16>
    %c0_1 = arith.constant 0 : index
    %c0_2 = arith.constant 0 : index
    %1 = vector.load %arg1[%c0_1, %c0_2] : memref<16x32xbf16, #tpu.memory_space<vmem>>, vector<16x32xbf16>
    %cst = arith.constant dense<0.000000e+00> : vector<4x32xf32>
    %2 = tpu.matmul %0, %1, %cst {dimension_numbers = #tpu.dot_dimension_numbers<[1], [0], [0], [1], [0, 0, 1, 1], [], []>} : vector<4x16xbf16>, vector<16x32xbf16>, vector<4x32xf32> -> vector<4x32xf32>
    %c0_3 = arith.constant 0 : index
    %c0_4 = arith.constant 0 : index
    %3 = vector.load %arg2[%c0_3, %c0_4] : memref<1x32xf32, #tpu.memory_space<vmem>>, vector<1x32xf32>
    %4 = vector.broadcast %3 : vector<1x32xf32> to vector<4x32xf32>
    %5 = arith.addf %2, %4 : vector<4x32xf32>
    %cst_5 = arith.constant 0.000000e+00 : f32
    %6 = vector.broadcast %cst_5 : f32 to vector<4x32xf32>
    %7 = arith.maximumf %5, %6 : vector<4x32xf32>
    %8 = arith.truncf %7 : vector<4x32xf32> to vector<4x32xbf16>
    %c0_6 = arith.constant 0 : index
    %c0_7 = arith.constant 0 : index
    %9 = vector.load %arg3[%c0_6, %c0_7] : memref<32x32xbf16, #tpu.memory_space<vmem>>, vector<32x32xbf16>
    %cst_8 = arith.constant dense<0.000000e+00> : vector<4x32xf32>
    %10 = tpu.matmul %8, %9, %cst_8 {dimension_numbers = #tpu.dot_dimension_numbers<[1], [0], [0], [1], [0, 0, 1, 1], [], []>} : vector<4x32xbf16>, vector<32x32xbf16>, vector<4x32xf32> -> vector<4x32xf32>
    %c0_9 = arith.constant 0 : index
    %c0_10 = arith.constant 0 : index
    %11 = vector.load %arg4[%c0_9, %c0_10] : memref<1x32xf32, #tpu.memory_space<vmem>>, vector<1x32xf32>
    %12 = vector.broadcast %11 : vector<1x32xf32> to vector<4x32xf32>
    %13 = arith.addf %10, %12 : vector<4x32xf32>
    %cst_11 = arith.constant 0.000000e+00 : f32
    %14 = vector.broadcast %cst_11 : f32 to vector<4x32xf32>
    %15 = arith.maximumf %13, %14 : vector<4x32xf32>
    %16 = arith.truncf %15 : vector<4x32xf32> to vector<4x32xbf16>
    %c0_12 = arith.constant 0 : index
    %c0_13 = arith.constant 0 : index
    %17 = vector.load %arg5[%c0_12, %c0_13] : memref<32x128xbf16, #tpu.memory_space<vmem>>, vector<32x128xbf16>
    %cst_14 = arith.constant dense<0.000000e+00> : vector<4x128xf32>
    %18 = tpu.matmul %16, %17, %cst_14 {dimension_numbers = #tpu.dot_dimension_numbers<[1], [0], [0], [1], [0, 0, 1, 1], [], []>} : vector<4x32xbf16>, vector<32x128xbf16>, vector<4x128xf32> -> vector<4x128xf32>
    %c0_15 = arith.constant 0 : index
    %c0_16 = arith.constant 0 : index
    %19 = vector.load %arg6[%c0_15, %c0_16] : memref<1x128xf32, #tpu.memory_space<vmem>>, vector<1x128xf32>
    %20 = vector.broadcast %19 : vector<1x128xf32> to vector<4x128xf32>
    %21 = arith.addf %18, %20 : vector<4x128xf32>
    %cst_17 = arith.constant 0.000000e+00 : f32
    %22 = vector.broadcast %cst_17 : f32 to vector<4x128xf32>
    %23 = arith.maximumf %21, %22 : vector<4x128xf32>
    %24 = arith.truncf %23 : vector<4x128xf32> to vector<4x128xbf16>
    %c0_18 = arith.constant 0 : index
    %c0_19 = arith.constant 0 : index
    %25 = vector.load %arg7[%c0_18, %c0_19] : memref<128x128xbf16, #tpu.memory_space<vmem>>, vector<128x128xbf16>
    %cst_20 = arith.constant dense<0.000000e+00> : vector<4x128xf32>
    %26 = tpu.matmul %24, %25, %cst_20 {dimension_numbers = #tpu.dot_dimension_numbers<[1], [0], [0], [1], [0, 0, 1, 1], [], []>} : vector<4x128xbf16>, vector<128x128xbf16>, vector<4x128xf32> -> vector<4x128xf32>
    %c0_21 = arith.constant 0 : index
    %c0_22 = arith.constant 0 : index
    %27 = vector.load %arg8[%c0_21, %c0_22] : memref<1x128xf32, #tpu.memory_space<vmem>>, vector<1x128xf32>
    %28 = vector.broadcast %27 : vector<1x128xf32> to vector<4x128xf32>
    %29 = arith.addf %26, %28 : vector<4x128xf32>
    %30 = arith.negf %29 : vector<4x128xf32>
    %31 = math.exp %30 : vector<4x128xf32>
    %cst_23 = arith.constant 1.000000e+00 : f32
    %32 = vector.broadcast %cst_23 : f32 to vector<4x128xf32>
    %33 = arith.addf %32, %31 : vector<4x128xf32>
    %34 = arith.divf %32, %33 : vector<4x128xf32>
    %35 = arith.truncf %34 : vector<4x128xf32> to vector<4x128xbf16>
    %c0_24 = arith.constant 0 : index
    %c0_25 = arith.constant 0 : index
    %36 = vector.load %arg9[%c0_24, %c0_25] : memref<4x128xbf16, #tpu.memory_space<vmem>>, vector<4x128xbf16>
    tpu.vector_store %arg9[%c0_24, %c0_25], %35 {strides = array<i32>} : memref<4x128xbf16, #tpu.memory_space<vmem>>, vector<4x128xbf16>,
    return
  }
}

</mosaic_0001>

<llo_original>
// kernel: mlp_benchmark_forward.1
$region0: #{mlp_benchmark_forward.1}
  #allocation0 [shape = 'u32[]', space=smem, size = 0x4, offset = 0x4, fixed_abs, tag = 'smem constant byte address 0x4 - core index']
  #allocation1 [shape = 'u32[144,128]{1,0:T(1,128)}', space=vmem, size = 0x12000, scoped, tag = 'internal scratch']
  %s0 = inlined_call_operand.vmem [shape: bf16[4,16], index: 0, kind: input, shape index: {}]
  %s1 = inlined_call_operand.vmem [shape: bf16[16,32], index: 1, kind: input, shape index: {}]
  %s2 = inlined_call_operand.vmem [shape: f32[1,32], index: 2, kind: input, shape index: {}]
  %s3 = inlined_call_operand.vmem [shape: bf16[32,32], index: 3, kind: input, shape index: {}]
  %s4 = inlined_call_operand.vmem [shape: f32[1,32], index: 4, kind: input, shape index: {}]
  %s5 = inlined_call_operand.vmem [shape: bf16[32,128], index: 5, kind: input, shape index: {}]
  %s6 = inlined_call_operand.vmem [shape: f32[1,128], index: 6, kind: input, shape index: {}]
  %s7 = inlined_call_operand.vmem [shape: bf16[128,128], index: 7, kind: input, shape index: {}]
  %s8 = inlined_call_operand.vmem [shape: f32[1,128], index: 8, kind: input, shape index: {}]
  %s9 = inlined_call_operand.hbm [shape: bf16[4,128], index: 9, kind: output, shape index: {}]
  %s10 = sld [smem:[#allocation0]]
  $region46: #{mlp_benchmark_forward.1} parent=0
    _
  %s12 = ssub.s32 1, %s10
  %s13 = scalar_select 0, %s12, %s10
  $region1: #{mlp_benchmark_forward.1} parent=0
    #allocation2 [shape = 'u8[1024]{0}', space=vmem, size = 0x400, scoped, tag = 'output window, operand 0, single buffered']
    #allocation3 [shape = 's32[1]{0}', space=sflag, size = 0x4, scoped, tag = 'scoped memory for mlp_benchmark_forward.1']
    %14 = vsyncpa [#allocation3], 0
    // Predicated region
    $region2: #{mlp_benchmark_forward.1} parent=1 // pred_check
      _
    $region3: #{mlp_benchmark_forward.1} parent=1 // pred_check_branch
      %16 = sbr.rel (0) target = $region5
    $region4: #{mlp_benchmark_forward.1} parent=1 // pred_region
      _
    $region5: #{mlp_benchmark_forward.1} parent=1 // pred_fallthru
      _
    // Predicated region
    $region6: #{mlp_benchmark_forward.1} parent=1 // pred_check
      _
    $region7: #{mlp_benchmark_forward.1} parent=1 // pred_check_branch
      %18 = sbr.rel (0) target = $region9
    $region8: #{mlp_benchmark_forward.1} parent=1 // pred_region
      _
    $region9: #{mlp_benchmark_forward.1} parent=1 // pred_fallthru
      _
    // Predicated region
    $region10: #{mlp_benchmark_forward.1} parent=1 // pred_check
      _
    $region11: #{mlp_benchmark_forward.1} parent=1 // pred_check_branch
      %20 = sbr.rel (0) target = $region13
    $region12: #{mlp_benchmark_forward.1} parent=1 // pred_region
      _
    $region13: #{mlp_benchmark_forward.1} parent=1 // pred_fallthru
      _
    // Predicated region
    $region14: #{mlp_benchmark_forward.1} parent=1 // pred_check
      _
    $region15: #{mlp_benchmark_forward.1} parent=1 // pred_check_branch
      %22 = sbr.rel (0) target = $region17
    $region16: #{mlp_benchmark_forward.1} parent=1 // pred_region
      _
    $region17: #{mlp_benchmark_forward.1} parent=1 // pred_fallthru
      _
    // Predicated region
    $region18: #{mlp_benchmark_forward.1} parent=1 // pred_check
      _
    $region19: #{mlp_benchmark_forward.1} parent=1 // pred_check_branch
      %24 = sbr.rel (0) target = $region21
    $region20: #{mlp_benchmark_forward.1} parent=1 // pred_region
      _
    $region21: #{mlp_benchmark_forward.1} parent=1 // pred_fallthru
      _
    // Predicated region
    $region22: #{mlp_benchmark_forward.1} parent=1 // pred_check
      _
    $region23: #{mlp_benchmark_forward.1} parent=1 // pred_check_branch
      %26 = sbr.rel (0) target = $region25
    $region24: #{mlp_benchmark_forward.1} parent=1 // pred_region
      _
    $region25: #{mlp_benchmark_forward.1} parent=1 // pred_fallthru
      _
    // Predicated region
    $region26: #{mlp_benchmark_forward.1} parent=1 // pred_check
      _
    $region27: #{mlp_benchmark_forward.1} parent=1 // pred_check_branch
      %28 = sbr.rel (0) target = $region29
    $region28: #{mlp_benchmark_forward.1} parent=1 // pred_region
      _
    $region29: #{mlp_benchmark_forward.1} parent=1 // pred_fallthru
      _
    // Predicated region
    $region30: #{mlp_benchmark_forward.1} parent=1 // pred_check
      _
    $region31: #{mlp_benchmark_forward.1} parent=1 // pred_check_branch
      %30 = sbr.rel (0) target = $region33
    $region32: #{mlp_benchmark_forward.1} parent=1 // pred_region
      _
    $region33: #{mlp_benchmark_forward.1} parent=1 // pred_fallthru
      _
    // Predicated region
    $region34: #{mlp_benchmark_forward.1} parent=1 // pred_check
      _
    $region35: #{mlp_benchmark_forward.1} parent=1 // pred_check_branch
      %32 = sbr.rel (0) target = $region37
    $region36: #{mlp_benchmark_forward.1} parent=1 // pred_region
      _
    $region37: #{mlp_benchmark_forward.1} parent=1 // pred_fallthru
      _
    %v34 = vld [vmem:[%s0] sm:$0x3]
    %v35 = vld [vmem:[%s1] sm:$0xf]
    %v36 = vld [vmem:[%s1 + $0x4] sm:$0xf]
    %v37 = vld [vmem:[%s2] sm:$0x1]
    %v39 = vlaneseq
    %v40 = vshrl.u32 %v39, 7
    %v41 = vsub.s32 0, %v40
    %v42 = vrot.slane %v37, %v41
    %v46 = vunpack.c.l.b16 %v35
    %v47 = vunpack.c.l.b16 %v36
    %v48 = vpack.c.b16 %v47, %v46
    %vm50 = vcmask 130048
    %v52 = vsel %vm50, %v34, 0
    %54 = vmatprep.subr.bf16.mxu0 0
    %55 = vmatpush1.bf16.msra.mxu0 %v48
    %56 = vmatprep.subr.bf16.mxu0 0
    %57 = vmatpush1.bf16.msra.mxu0 0
    %58 = vmatprep.subr.bf16.mxu0 0
    %59 = vmatpush1.bf16.msra.mxu0 0
    %60 = vmatprep.subr.bf16.mxu0 0
    %61 = vmatpush1.bf16.msra.mxu0 0
    %62 = vmatprep.subr.bf16.mxu0 0
    %63 = vmatpush1.bf16.msra.mxu0 0
    %64 = vmatprep.subr.bf16.mxu0 0
    %65 = vmatpush1.bf16.msra.mxu0 0
    %66 = vmatprep.subr.bf16.mxu0 0
    %67 = vmatpush1.bf16.msra.mxu0 0
    %68 = vmatprep.subr.bf16.mxu0 0
    %69 = vmatpush1.bf16.msra.mxu0 0
    %70 = vmatprep.subr.bf16.mxu0 0
    %71 = vmatpush1.bf16.msra.mxu0 0
    %72 = vmatprep.subr.bf16.mxu0 0
    %73 = vmatpush1.bf16.msra.mxu0 0
    %74 = vmatprep.subr.bf16.mxu0 0
    %75 = vmatpush1.bf16.msra.mxu0 0
    %76 = vmatprep.subr.bf16.mxu0 0
    %77 = vmatpush1.bf16.msra.mxu0 0
    %78 = vmatprep.subr.bf16.mxu0 0
    %79 = vmatpush1.bf16.msra.mxu0 0
    %80 = vmatprep.subr.bf16.mxu0 0
    %81 = vmatpush1.bf16.msra.mxu0 0
    %82 = vmatprep.subr.bf16.mxu0 0
    %83 = vmatpush1.bf16.msra.mxu0 0
    %84 = vmatprep.subr.bf16.mxu0 0
    %85 = vmatpush1.bf16.msra.mxu0 0
    %86 = vmatprep.mubr.bf16.mxu0 0
    %87 = vmatmul.mubr.bf16.gmra.mrb[0].mxu0 %v52
    %v88 = vpop.f32.mrb[0].mxu0
    %v89 = vadd.f32 %v42, %v88
    %v90 = vpop.f32.mrb[0].mxu0
    %v91 = vpop.f32.mrb[0].mxu0
    %v92 = vpop.f32.mrb[0].mxu0
    %93 = vdwg.mxu0
    %v94 = vmax.f32 %v89, 0.0
    %v95 = vpack.c.bf16 %v94, %v94
    %v96 = vld [vmem:[%s3] sm:$0xf]
    %v97 = vld [vmem:[%s3 + $0x4] sm:$0xf]
    %v98 = vld [vmem:[%s3 + $0x8] sm:$0xf]
    %v99 = vld [vmem:[%s3 + $0xc] sm:$0xf]
    %v100 = vld [vmem:[%s4] sm:$0x1]
    %v102 = vlaneseq
    %v103 = vshrl.u32 %v102, 7
    %v104 = vsub.s32 0, %v103
    %v105 = vrot.slane %v100, %v104
    %v111 = vunpack.c.l.b16 %v96
    %v112 = vunpack.c.l.b16 %v97
    %v113 = vunpack.c.l.b16 %v98
    %v114 = vunpack.c.l.b16 %v99
    %v115 = vpack.c.b16 %v112, %v111
    %v116 = vpack.c.b16 %v114, %v113
    %vm119 = vcmask 261120
    %v121 = vsel %vm119, %v95, 0
    %123 = vmatprep.subr.bf16.mxu0 0
    %124 = vmatpush1.bf16.msra.mxu0 %v115
    %125 = vmatprep.subr.bf16.mxu0 0
    %126 = vmatpush1.bf16.msra.mxu0 %v116
    %127 = vmatprep.subr.bf16.mxu0 0
    %128 = vmatpush1.bf16.msra.mxu0 0
    %129 = vmatprep.subr.bf16.mxu0 0
    %130 = vmatpush1.bf16.msra.mxu0 0
    %131 = vmatprep.subr.bf16.mxu0 0
    %132 = vmatpush1.bf16.msra.mxu0 0
    %133 = vmatprep.subr.bf16.mxu0 0
    %134 = vmatpush1.bf16.msra.mxu0 0
    %135 = vmatprep.subr.bf16.mxu0 0
    %136 = vmatpush1.bf16.msra.mxu0 0
    %137 = vmatprep.subr.bf16.mxu0 0
    %138 = vmatpush1.bf16.msra.mxu0 0
    %139 = vmatprep.subr.bf16.mxu0 0
    %140 = vmatpush1.bf16.msra.mxu0 0
    %141 = vmatprep.subr.bf16.mxu0 0
    %142 = vmatpush1.bf16.msra.mxu0 0
    %143 = vmatprep.subr.bf16.mxu0 0
    %144 = vmatpush1.bf16.msra.mxu0 0
    %145 = vmatprep.subr.bf16.mxu0 0
    %146 = vmatpush1.bf16.msra.mxu0 0
    %147 = vmatprep.subr.bf16.mxu0 0
    %148 = vmatpush1.bf16.msra.mxu0 0
    %149 = vmatprep.subr.bf16.mxu0 0
    %150 = vmatpush1.bf16.msra.mxu0 0
    %151 = vmatprep.subr.bf16.mxu0 0
    %152 = vmatpush1.bf16.msra.mxu0 0
    %153 = vmatprep.subr.bf16.mxu0 0
    %154 = vmatpush1.bf16.msra.mxu0 0
    %155 = vmatprep.mubr.bf16.mxu0 0
    %156 = vmatmul.mubr.bf16.gmra.mrb[0].mxu0 %v121
    %v157 = vpop.f32.mrb[0].mxu0
    %v158 = vadd.f32 %v105, %v157
    %v159 = vpop.f32.mrb[0].mxu0
    %v160 = vpop.f32.mrb[0].mxu0
    %v161 = vpop.f32.mrb[0].mxu0
    %162 = vdwg.mxu0
    %v163 = vmax.f32 %v158, 0.0
    %v164 = vpack.c.bf16 %v163, %v163
    %v165 = vld [vmem:[%s5] sm:$0xf]
    %v166 = vld [vmem:[%s5 + $0x4] sm:$0xf]
    %v167 = vld [vmem:[%s5 + $0x8] sm:$0xf]
    %v168 = vld [vmem:[%s5 + $0xc] sm:$0xf]
    %v169 = vld [vmem:[%s6] sm:$0x1]
    %v171 = vlaneseq
    %v172 = vshrl.u32 %v171, 7
    %v173 = vsub.s32 0, %v172
    %v174 = vrot.slane %v169, %v173
    %v180 = vunpack.c.l.b16 %v165
    %v181 = vunpack.c.l.b16 %v166
    %v182 = vunpack.c.l.b16 %v167
    %v183 = vunpack.c.l.b16 %v168
    %v184 = vpack.c.b16 %v181, %v180
    %v185 = vpack.c.b16 %v183, %v182
    %v189 = vsel %vm119, %v164, 0
    %191 = vmatprep.subr.bf16.mxu0 0
    %192 = vmatpush1.bf16.msra.mxu0 %v184
    %193 = vmatprep.subr.bf16.mxu0 0
    %194 = vmatpush1.bf16.msra.mxu0 %v185
    %195 = vmatprep.subr.bf16.mxu0 0
    %196 = vmatpush1.bf16.msra.mxu0 0
    %197 = vmatprep.subr.bf16.mxu0 0
    %198 = vmatpush1.bf16.msra.mxu0 0
    %199 = vmatprep.subr.bf16.mxu0 0
    %200 = vmatpush1.bf16.msra.mxu0 0
    %201 = vmatprep.subr.bf16.mxu0 0
    %202 = vmatpush1.bf16.msra.mxu0 0
    %203 = vmatprep.subr.bf16.mxu0 0
    %204 = vmatpush1.bf16.msra.mxu0 0
    %205 = vmatprep.subr.bf16.mxu0 0
    %206 = vmatpush1.bf16.msra.mxu0 0
    %207 = vmatprep.subr.bf16.mxu0 0
    %208 = vmatpush1.bf16.msra.mxu0 0
    %209 = vmatprep.subr.bf16.mxu0 0
    %210 = vmatpush1.bf16.msra.mxu0 0
    %211 = vmatprep.subr.bf16.mxu0 0
    %212 = vmatpush1.bf16.msra.mxu0 0
    %213 = vmatprep.subr.bf16.mxu0 0
    %214 = vmatpush1.bf16.msra.mxu0 0
    %215 = vmatprep.subr.bf16.mxu0 0
    %216 = vmatpush1.bf16.msra.mxu0 0
    %217 = vmatprep.subr.bf16.mxu0 0
    %218 = vmatpush1.bf16.msra.mxu0 0
    %219 = vmatprep.subr.bf16.mxu0 0
    %220 = vmatpush1.bf16.msra.mxu0 0
    %221 = vmatprep.subr.bf16.mxu0 0
    %222 = vmatpush1.bf16.msra.mxu0 0
    %223 = vmatprep.mubr.bf16.mxu0 0
    %224 = vmatmul.mubr.bf16.gmra.mrb[0].mxu0 %v189
    %v225 = vpop.f32.mrb[0].mxu0
    %v226 = vadd.f32 %v174, %v225
    %v227 = vpop.f32.mrb[0].mxu0
    %v228 = vpop.f32.mrb[0].mxu0
    %v229 = vpop.f32.mrb[0].mxu0
    %230 = vdwg.mxu0
    %v231 = vmax.f32 %v226, 0.0
    %v232 = vpack.c.bf16 %v231, %v231
    %v233 = vld [vmem:[%s7] sm:$0xf]
    %v234 = vld [vmem:[%s7 + $0x4] sm:$0xf]
    %v235 = vld [vmem:[%s7 + $0x8] sm:$0xf]
    %v236 = vld [vmem:[%s7 + $0xc] sm:$0xf]
    %v237 = vld [vmem:[%s7 + $0x10] sm:$0xf]
    %v238 = vld [vmem:[%s7 + $0x14] sm:$0xf]
    %v239 = vld [vmem:[%s7 + $0x18] sm:$0xf]
    %v240 = vld [vmem:[%s7 + $0x1c] sm:$0xf]
    %v241 = vld [vmem:[%s7 + $0x20] sm:$0xf]
    %v242 = vld [vmem:[%s7 + $0x24] sm:$0xf]
    %v243 = vld [vmem:[%s7 + $0x28] sm:$0xf]
    %v244 = vld [vmem:[%s7 + $0x2c] sm:$0xf]
    %v245 = vld [vmem:[%s7 + $0x30] sm:$0xf]
    %v246 = vld [vmem:[%s7 + $0x34] sm:$0xf]
    %v247 = vld [vmem:[%s7 + $0x38] sm:$0xf]
    %v248 = vld [vmem:[%s7 + $0x3c] sm:$0xf]
    %v249 = vld [vmem:[%s8] sm:$0x1]
    %v251 = vlaneseq
    %v252 = vshrl.u32 %v251, 7
    %v253 = vsub.s32 0, %v252
    %v254 = vrot.slane %v249, %v253
    %v272 = vunpack.c.l.b16 %v233
    %v273 = vunpack.c.l.b16 %v234
    %v274 = vunpack.c.l.b16 %v235
    %v275 = vunpack.c.l.b16 %v236
    %v276 = vunpack.c.l.b16 %v237
    %v277 = vunpack.c.l.b16 %v238
    %v278 = vunpack.c.l.b16 %v239
    %v279 = vunpack.c.l.b16 %v240
    %v280 = vunpack.c.l.b16 %v241
    %v281 = vunpack.c.l.b16 %v242
    %v282 = vunpack.c.l.b16 %v243
    %v283 = vunpack.c.l.b16 %v244
    %v284 = vunpack.c.l.b16 %v245
    %v285 = vunpack.c.l.b16 %v246
    %v286 = vunpack.c.l.b16 %v247
    %v287 = vunpack.c.l.b16 %v248
    %v288 = vpack.c.b16 %v273, %v272
    %v289 = vpack.c.b16 %v275, %v274
    %v290 = vpack.c.b16 %v277, %v276
    %v291 = vpack.c.b16 %v279, %v278
    %v292 = vpack.c.b16 %v281, %v280
    %v293 = vpack.c.b16 %v283, %v282
    %v294 = vpack.c.b16 %v285, %v284
    %v295 = vpack.c.b16 %v287, %v286
    %304 = vmatprep.subr.bf16.mxu0 0
    %305 = vmatpush1.bf16.msra.mxu0 %v288
    %306 = vmatprep.subr.bf16.mxu0 0
    %307 = vmatpush1.bf16.msra.mxu0 %v289
    %308 = vmatprep.subr.bf16.mxu0 0
    %309 = vmatpush1.bf16.msra.mxu0 %v290
    %310 = vmatprep.subr.bf16.mxu0 0
    %311 = vmatpush1.bf16.msra.mxu0 %v291
    %312 = vmatprep.subr.bf16.mxu0 0
    %313 = vmatpush1.bf16.msra.mxu0 %v292
    %314 = vmatprep.subr.bf16.mxu0 0
    %315 = vmatpush1.bf16.msra.mxu0 %v293
    %316 = vmatprep.subr.bf16.mxu0 0
    %317 = vmatpush1.bf16.msra.mxu0 %v294
    %318 = vmatprep.subr.bf16.mxu0 0
    %319 = vmatpush1.bf16.msra.mxu0 %v295
    %320 = vmatprep.subr.bf16.mxu0 0
    %321 = vmatpush1.bf16.msra.mxu0 0
    %322 = vmatprep.subr.bf16.mxu0 0
    %323 = vmatpush1.bf16.msra.mxu0 0
    %324 = vmatprep.subr.bf16.mxu0 0
    %325 = vmatpush1.bf16.msra.mxu0 0
    %326 = vmatprep.subr.bf16.mxu0 0
    %327 = vmatpush1.bf16.msra.mxu0 0
    %328 = vmatprep.subr.bf16.mxu0 0
    %329 = vmatpush1.bf16.msra.mxu0 0
    %330 = vmatprep.subr.bf16.mxu0 0
    %331 = vmatpush1.bf16.msra.mxu0 0
    %332 = vmatprep.subr.bf16.mxu0 0
    %333 = vmatpush1.bf16.msra.mxu0 0
    %334 = vmatprep.subr.bf16.mxu0 0
    %335 = vmatpush1.bf16.msra.mxu0 0
    %336 = vmatprep.mubr.bf16.mxu0 0
    %337 = vmatmul.mubr.bf16.gmra.mrb[0].mxu0 %v232
    %v338 = vpop.f32.mrb[0].mxu0
    %v339 = vadd.f32 %v254, %v338
    %v340 = vpop.f32.mrb[0].mxu0
    %v341 = vpop.f32.mrb[0].mxu0
    %v342 = vpop.f32.mrb[0].mxu0
    %343 = vdwg.mxu0
    %v344 = vxor.u32 %v339, 2147483648
    %v345 = vmul.f32 %v344, 1.442695
    %v346 = vpow.pop %v345
    %v347 = vadd.f32 %v346, 1.0
    %v348 = vrcp.pop %v347
    %v349 = vmul.f32 1.0, %v348
    %v350 = vpack.c.bf16 %v349, %v349
    %351 = vst [vmem:[#allocation2] sm:$0x3] %v350
    // Predicated region
    $region38: #{mlp_benchmark_forward.1} parent=1 // pred_check
      _
    $region39: #{mlp_benchmark_forward.1} parent=1 // pred_check_branch
      %353 = sbr.rel (0) target = $region41
    $region40: #{mlp_benchmark_forward.1} parent=1 // pred_region
      %s355 = ssub.s32 32, 32
      %356 = vsyncadd [#allocation3], %s355
      %s358 = sshll.u32 [#allocation2], 4
      %s359 = int_to_ptr.vmem [resolvable:$true] %s358
      %361 = dma.vmem_to_hbm [thread:$0]  %s359, 32, %s9, [#allocation3]
    $region41: #{mlp_benchmark_forward.1} parent=1 // pred_fallthru
      _
    // Predicated region
    $region42: #{mlp_benchmark_forward.1} parent=1 // pred_check
      _
    $region43: #{mlp_benchmark_forward.1} parent=1 // pred_check_branch
      %363 = sbr.rel (0) target = $region45
    $region44: #{mlp_benchmark_forward.1} parent=1 // pred_region
      %364 = dma.done [#allocation3], 32
    $region45: #{mlp_benchmark_forward.1} parent=1 // pred_fallthru
      _
    %365 = vsyncpa [#allocation3], 1

</llo_original>
